<compile_context>
chip_gen: v7x
topology: tpu7x:2x2x1
jax: 0.10.0
libtpu: 0.0.40
codegen_flags: <defaults>
</compile_context>

<pallas_src>
import functools

import jax
import jax.numpy as jnp
from jax.experimental import pallas as pl
from jax.experimental.pallas import tpu as pltpu


def _round_up(x, m):
    return ((x + m - 1) // m) * m


def _sublane_multiple(dtype):
    # 8 for 4-byte, 16 for bf16/f16, 32 for int8/fp8.
    itemsize = jnp.dtype(dtype).itemsize
    return max(8, 32 // max(itemsize, 1))


def _vmem_budget_and_limit():
    """Generation-aware VMEM budgeting.

    v5e/v6e have 128 MiB VMEM per TensorCore, v7x only 64 MiB.  Keep the
    pipelined block footprint ~55% of physical and the requested scoped limit
    ~75%, so v7x stays safe while v5e/v6e get big, roofline-filling blocks.
    """
    try:
        cap = pltpu.get_tpu_info().vmem_capacity_bytes
    except Exception:
        cap = 64 << 20  # conservative fallback (v7x per-TC size)
    budget = min(int(cap * 0.55), 72 << 20)
    limit = min(int(cap * 0.75), 96 << 20)
    return budget, limit


def _choose_tile_rows(BC, HW, itemsize, sublane, vmem_budget):
    """Pick the row-tile size for the (BC, HW) streaming grid."""
    if BC <= sublane:
        # Single full-extent block along rows (allowed: equals the array dim).
        return BC

    # Hard ceiling: double-buffered input + output blocks + ~2 f32 temp rows
    # must fit the per-generation budget.
    bytes_per_row = (4 * itemsize + 8) * _round_up(HW, 128)
    tile = vmem_budget // max(bytes_per_row, 1)

    # Target >= 8 grid steps (>= 4 per TensorCore on v7x) so the DMA pipeline
    # streams, but never shrink a block below ~1 MiB of input (amortizes the
    # ~0.35 us per-step overhead / keeps HBM near roofline).
    min_rows_for_bw = pl.cdiv(1 << 20, max(HW * itemsize, 1))
    eight_way = pl.cdiv(BC, 8)
    tile = min(tile, max(eight_way, min_rows_for_bw))

    # Snap to the dtype sublane multiple; keep every block except the last
    # fully in bounds (ragged last block handled by masked loads/stores).
    tile = min((tile // sublane) * sublane, (BC // sublane) * sublane)
    return max(sublane, tile)


def _adain_kernel(x_ref, w_ref, b_ref, o_ref, *, eps, inv_n):
    # x_ref:       (tile_rows, HW)  one tile of flattened instances
    # w_ref/b_ref: (tile_rows, 1)   per-instance affine for this tile
    xf = x_ref[...].astype(jnp.float32)
    inv_nf = jnp.float32(inv_n)

    # Two-pass (mean-centered) statistics: avoids E[x^2]-E[x]^2 cancellation,
    # and `centered` is reused for the normalize, so it costs nothing extra.
    mean = jnp.sum(xf, axis=-1, keepdims=True) * inv_nf            # (rows, 1)
    centered = xf - mean
    var = jnp.sum(centered * centered, axis=-1, keepdims=True) * inv_nf
    inv_std = jax.lax.rsqrt(var + jnp.float32(eps))                # (rows, 1)

    w = w_ref[...].astype(jnp.float32)
    b = b_ref[...].astype(jnp.float32)

    # y = (x - mean) * inv_std * w + b, all in f32, single cast at the store.
    o_ref[...] = (centered * (inv_std * w) + b).astype(o_ref.dtype)


def adaptive_instance_norm_2d(x, weight, bias, *, eps=1e-5):
    """x: (B, C, H, W); weight, bias: (B*C,) — as assigned externally in AdaIN."""
    B, C, H, W = x.shape
    BC, HW = B * C, H * W
    assert weight.shape == (BC,) and bias.shape == (BC,)

    # Free reshapes (contiguous row-major layout) — no extra HBM traffic.
    x2d = x.reshape(BC, HW)
    w2d = weight.reshape(BC, 1)
    b2d = bias.reshape(BC, 1)

    itemsize = jnp.dtype(x.dtype).itemsize
    sublane = _sublane_multiple(x.dtype)
    budget, vmem_limit = _vmem_budget_and_limit()
    tile_rows = _choose_tile_rows(BC, HW, itemsize, sublane, budget)
    grid = (pl.cdiv(BC, tile_rows),)

    kernel = functools.partial(_adain_kernel, eps=eps, inv_n=1.0 / HW)

    out2d = pl.pallas_call(
        kernel,
        out_shape=jax.ShapeDtypeStruct((BC, HW), x.dtype),
        grid_spec=pltpu.PrefetchScalarGridSpec(
            num_scalar_prefetch=0,
            grid=grid,
            in_specs=[
                # Last block dim == full HW extent (lane-masked if ragged);
                # ragged last row-block handled by masked loads/stores.
                pl.BlockSpec((tile_rows, HW), lambda i: (i, 0)),
                # weight / bias streamed per step — tiny DMAs, fully hidden
                # by the pipeline; footprint independent of B*C.
                pl.BlockSpec((tile_rows, 1), lambda i: (i, 0)),
                pl.BlockSpec((tile_rows, 1), lambda i: (i, 0)),
            ],
            out_specs=pl.BlockSpec((tile_rows, HW), lambda i: (i, 0)),
        ),
        compiler_params=pltpu.CompilerParams(
            dimension_semantics=("parallel",),
            vmem_limit_bytes=vmem_limit,
        ),
    )(x2d, w2d, b2d)

    return out2d.reshape(B, C, H, W)


def _reference(x, weight, bias, eps=1e-5):
    B, C, H, W = x.shape
    x2d = x.reshape(B * C, H * W).astype(jnp.float32)
    mean = x2d.mean(axis=-1, keepdims=True)
    var = x2d.var(axis=-1, keepdims=True)  # biased, matches batch_norm(training=True)
    out = (x2d - mean) / jnp.sqrt(var + eps)
    out = out * weight[:, None] + bias[:, None]
    return out.reshape(B, C, H, W).astype(x.dtype)


if __name__ == "__main__":
    key = jax.random.PRNGKey(0)

    # Case 1: lane-aligned shapes (B=2, C=4, 16x16).
    B, C, H, W = 2, 4, 16, 16
    kx, kw, kb, key = jax.random.split(key, 4)
    x = jax.random.normal(kx, (B, C, H, W), dtype=jnp.float32)
    weight = 1.0 + 0.1 * jax.random.normal(kw, (B * C,), dtype=jnp.float32)
    bias = 0.1 * jax.random.normal(kb, (B * C,), dtype=jnp.float32)

    out = adaptive_instance_norm_2d(x, weight, bias, eps=1e-5)
    out = jax.block_until_ready(out)
    ref = _reference(x, weight, bias, eps=1e-5)
    assert out.shape == (B, C, H, W)
    assert jnp.allclose(out, ref, atol=1e-4, rtol=1e-4)

    # Case 2: ragged shapes exercising masked boundary blocks (B=2, C=5, 7x7).
    B2, C2, H2, W2 = 2, 5, 7, 7
    kx2, kw2, kb2, key = jax.random.split(key, 4)
    x2 = jax.random.normal(kx2, (B2, C2, H2, W2), dtype=jnp.float32)
    weight2 = 1.0 + 0.1 * jax.random.normal(kw2, (B2 * C2,), dtype=jnp.float32)
    bias2 = 0.1 * jax.random.normal(kb2, (B2 * C2,), dtype=jnp.float32)

    out2 = adaptive_instance_norm_2d(x2, weight2, bias2, eps=1e-5)
    out2 = jax.block_until_ready(out2)
    ref2 = _reference(x2, weight2, bias2, eps=1e-5)
    assert out2.shape == (B2, C2, H2, W2)
    assert jnp.allclose(out2, ref2, atol=1e-4, rtol=1e-4)

    print("KERNEL_OK")
</pallas_src>

<mosaic_0001>
module attributes {stable_mosaic.version = 11 : i64} {
  func.func @_adain_kernel(%arg0: i32, %arg1: memref<8x256xf32, #tpu.memory_space<vmem>>, %arg2: memref<8x1xf32, #tpu.memory_space<vmem>>, %arg3: memref<8x1xf32, #tpu.memory_space<vmem>>, %arg4: memref<8x256xf32, #tpu.memory_space<vmem>>) attributes {dimension_semantics = [#tpu.dimension_semantics<parallel>], iteration_bounds = array<i64: 1>, scalar_prefetch = 0 : i64, scratch_operands = 0 : i64, tpu.core_type = #tpu.core_type<tc>, window_params = [{transform_indices = @transform_0, window_bounds = array<i64: 8, 256>}, {transform_indices = @transform_1, window_bounds = array<i64: 8, 1>}, {transform_indices = @transform_2, window_bounds = array<i64: 8, 1>}, {transform_indices = @transform_3, window_bounds = array<i64: 8, 256>}]} {
    %c0 = arith.constant 0 : index
    %c0_0 = arith.constant 0 : index
    %0 = vector.load %arg1[%c0, %c0_0] : memref<8x256xf32, #tpu.memory_space<vmem>>, vector<8x256xf32>
    %cst = arith.constant dense<0.000000e+00> : vector<8xf32>
    %1 = vector.multi_reduction <add>, %0, %cst [1] : vector<8x256xf32> to vector<8xf32>
    %2 = vector.shape_cast %1 : vector<8xf32> to vector<8x1xf32>
    %cst_1 = arith.constant 3.906250e-03 : f32
    %3 = vector.broadcast %cst_1 : f32 to vector<8x1xf32>
    %4 = arith.mulf %2, %3 : vector<8x1xf32>
    %5 = vector.broadcast %4 : vector<8x1xf32> to vector<8x256xf32>
    %6 = arith.subf %0, %5 : vector<8x256xf32>
    %7 = arith.mulf %6, %6 : vector<8x256xf32>
    %cst_2 = arith.constant dense<0.000000e+00> : vector<8xf32>
    %8 = vector.multi_reduction <add>, %7, %cst_2 [1] : vector<8x256xf32> to vector<8xf32>
    %9 = vector.shape_cast %8 : vector<8xf32> to vector<8x1xf32>
    %cst_3 = arith.constant 3.906250e-03 : f32
    %10 = vector.broadcast %cst_3 : f32 to vector<8x1xf32>
    %11 = arith.mulf %9, %10 : vector<8x1xf32>
    %cst_4 = arith.constant 9.99999974E-6 : f32
    %12 = vector.broadcast %cst_4 : f32 to vector<8x1xf32>
    %13 = arith.addf %11, %12 : vector<8x1xf32>
    %14 = math.rsqrt %13 : vector<8x1xf32>
    %c0_5 = arith.constant 0 : index
    %c0_6 = arith.constant 0 : index
    %15 = vector.load %arg2[%c0_5, %c0_6] : memref<8x1xf32, #tpu.memory_space<vmem>>, vector<8x1xf32>
    %c0_7 = arith.constant 0 : index
    %c0_8 = arith.constant 0 : index
    %16 = vector.load %arg3[%c0_7, %c0_8] : memref<8x1xf32, #tpu.memory_space<vmem>>, vector<8x1xf32>
    %17 = arith.mulf %14, %15 : vector<8x1xf32>
    %18 = vector.broadcast %17 : vector<8x1xf32> to vector<8x256xf32>
    %19 = arith.mulf %6, %18 : vector<8x256xf32>
    %20 = vector.broadcast %16 : vector<8x1xf32> to vector<8x256xf32>
    %21 = arith.addf %19, %20 : vector<8x256xf32>
    %c0_9 = arith.constant 0 : index
    %c0_10 = arith.constant 0 : index
    %22 = vector.load %arg4[%c0_9, %c0_10] : memref<8x256xf32, #tpu.memory_space<vmem>>, vector<8x256xf32>
    tpu.vector_store %arg4[%c0_9, %c0_10], %21 {strides = array<i32>} : memref<8x256xf32, #tpu.memory_space<vmem>>, vector<8x256xf32>,
    return
  }
  func.func @transform_0(%arg0: i32) -> (i32, i32) {
    %c0_i32 = arith.constant 0 : i32
    %c0_i32_0 = arith.constant 0 : i32
    return %arg0, %c0_i32 : i32, i32
  }
  func.func @transform_1(%arg0: i32) -> (i32, i32) {
    %c0_i32 = arith.constant 0 : i32
    %c0_i32_0 = arith.constant 0 : i32
    return %arg0, %c0_i32 : i32, i32
  }
  func.func @transform_2(%arg0: i32) -> (i32, i32) {
    %c0_i32 = arith.constant 0 : i32
    %c0_i32_0 = arith.constant 0 : i32
    return %arg0, %c0_i32 : i32, i32
  }
  func.func @transform_3(%arg0: i32) -> (i32, i32) {
    %c0_i32 = arith.constant 0 : i32
    %c0_i32_0 = arith.constant 0 : i32
    return %arg0, %c0_i32 : i32, i32
  }
}

</mosaic_0001>

<llo_original>
// kernel: tpu_custom_call.1
$region0: #{tpu_custom_call.1}
  #allocation0 [shape = 'u32[]', space=smem, size = 0x4, offset = 0x4, fixed_abs, tag = 'smem constant byte address 0x4 - core index']
  #allocation1 [shape = 'u32[144,128]{1,0:T(1,128)}', space=vmem, size = 0x12000, scoped, tag = 'internal scratch']
  %s0 = inlined_call_operand.vmem [shape: f32[8,256], index: 0, kind: input, shape index: {}]
  %s1 = inlined_call_operand.vmem [shape: f32[8,1], index: 1, kind: input, shape index: {}]
  %s2 = inlined_call_operand.vmem [shape: f32[8,1], index: 2, kind: input, shape index: {}]
  %s3 = inlined_call_operand.hbm [shape: f32[8,256], index: 3, kind: output, shape index: {}]
  %s4 = sld [smem:[#allocation0]]
  $region22: #{tpu_custom_call.1} parent=0
    _
  %s6 = ssub.s32 1, %s4
  %s7 = scalar_select 0, %s6, %s4
  $region1: #{tpu_custom_call.1} parent=0
    #allocation2 [shape = 'u8[8192]{0}', space=vmem, size = 0x2000, scoped, tag = 'output window, operand 0, single buffered']
    #allocation3 [shape = 's32[1]{0}', space=sflag, size = 0x4, scoped, tag = 'scoped memory for tpu_custom_call.1']
    %8 = vsyncpa [#allocation3], 0
    // Predicated region
    $region2: #{tpu_custom_call.1} parent=1 // pred_check
      _
    $region3: #{tpu_custom_call.1} parent=1 // pred_check_branch
      %10 = sbr.rel (0) target = $region5
    $region4: #{tpu_custom_call.1} parent=1 // pred_region
      _
    $region5: #{tpu_custom_call.1} parent=1 // pred_fallthru
      _
    // Predicated region
    $region6: #{tpu_custom_call.1} parent=1 // pred_check
      _
    $region7: #{tpu_custom_call.1} parent=1 // pred_check_branch
      %12 = sbr.rel (0) target = $region9
    $region8: #{tpu_custom_call.1} parent=1 // pred_region
      _
    $region9: #{tpu_custom_call.1} parent=1 // pred_fallthru
      _
    // Predicated region
    $region10: #{tpu_custom_call.1} parent=1 // pred_check
      _
    $region11: #{tpu_custom_call.1} parent=1 // pred_check_branch
      %14 = sbr.rel (0) target = $region13
    $region12: #{tpu_custom_call.1} parent=1 // pred_region
      _
    $region13: #{tpu_custom_call.1} parent=1 // pred_fallthru
      _
    %v15 = vld [vmem:[%s0] sm:$0xff]
    %v16 = vld [vmem:[%s0 + $0x8] sm:$0xff]
    %v17 = vadd.f32 %v15, %v16
    %18 = vadd.xlane.f32.xlu0 %v17
    %v19 = vpop.xlane.xlu0 %18
    %v20 = vmul.f32 %v19, 0.00390625
    %v21 = vsub.f32 %v15, %v20
    %v22 = vsub.f32 %v16, %v20
    %v23 = vmul.f32 %v21, %v21
    %v24 = vmul.f32 %v22, %v22
    %v25 = vadd.f32 %v23, %v24
    %26 = vadd.xlane.f32.xlu0 %v25
    %v27 = vpop.xlane.xlu0 %26
    %v28 = vmul.f32 %v27, 0.00390625
    %v29 = vadd.f32 %v28, 1e-05
    %v30 = vrsqrt.pop %v29
    %v31 = vld [vmem:[%s1] sm:$0xff]
    %v32 = vld [vmem:[%s2] sm:$0xff]
    %v33 = vmul.f32 %v30, %v31
    %35 = vset.pattern.permute.xlu0 0
    %36 = vperm.xlu0 %35, %v33
    %v37 = vpop.permute.xlu0 %36
    %v39 = vmul.f32 %v21, %v37
    %v40 = vmul.f32 %v22, %v37
    %42 = vset.pattern.permute.xlu0 0
    %43 = vperm.xlu0 %42, %v32
    %v44 = vpop.permute.xlu0 %43
    %v46 = vadd.f32 %v39, %v44
    %v47 = vadd.f32 %v40, %v44
    %48 = vst [vmem:[#allocation2] sm:$0xff] %v46
    %49 = vst [vmem:[#allocation2 + $0x8] sm:$0xff] %v47
    // Predicated region
    $region14: #{tpu_custom_call.1} parent=1 // pred_check
      _
    $region15: #{tpu_custom_call.1} parent=1 // pred_check_branch
      %51 = sbr.rel (0) target = $region17
    $region16: #{tpu_custom_call.1} parent=1 // pred_region
      %s53 = ssub.s32 256, 256
      %54 = vsyncadd [#allocation3], %s53
      %s56 = sshll.u32 [#allocation2], 4
      %s57 = int_to_ptr.vmem [resolvable:$true] %s56
      %59 = dma.vmem_to_hbm [thread:$0]  %s57, 256, %s3, [#allocation3]
    $region17: #{tpu_custom_call.1} parent=1 // pred_fallthru
      _
    // Predicated region
    $region18: #{tpu_custom_call.1} parent=1 // pred_check
      _
    $region19: #{tpu_custom_call.1} parent=1 // pred_check_branch
      %61 = sbr.rel (0) target = $region21
    $region20: #{tpu_custom_call.1} parent=1 // pred_region
      %62 = dma.done [#allocation3], 256
    $region21: #{tpu_custom_call.1} parent=1 // pred_fallthru
      _
    %63 = vsyncpa [#allocation3], 1

</llo_original>
